<compile_context>
chip_gen: v5e
topology: v5e:2x2
jax: 0.10.0
libtpu: 0.0.40
codegen_flags: <defaults>
</compile_context>

<pallas_src>
import jax
import jax.numpy as jnp
from jax.experimental import pallas as pl
from jax.experimental.pallas import tpu as pltpu


def _ibfcomm_kernel(x_ref, w1_ref, b1_ref, w2_ref, b2_ref, w3_ref, b3_ref,
                    mu_ref):
    x = x_ref[...]

    # fc1 + ReLU  (MXU matmul, f32 accumulation)
    h1 = jnp.dot(x, w1_ref[...], preferred_element_type=jnp.float32) + b1_ref[...]
    h1 = jnp.maximum(h1, 0.0)

    # fc2 + ReLU
    h2 = jnp.dot(h1, w2_ref[...], preferred_element_type=jnp.float32) + b2_ref[...]
    h2 = jnp.maximum(h2, 0.0)

    # fc3 -> mu (already a lane-dense slab thanks to the block-diag packing)
    mu = jnp.dot(h2, w3_ref[...], preferred_element_type=jnp.float32) + b3_ref[...]
    mu_ref[...] = mu.astype(mu_ref.dtype)


def _round_up(x, m):
    return ((x + m - 1) // m) * m


def ibfcomm_forward(inputs, w1, b1, w2, b2, w3, b3, *,
                    pack=8, tile_b=4096, core_parallel=False):
    """Fused fc1->relu->fc2->relu->fc3 forward. Returns (mu, sigma).

    pack:   batch rows packed per lane-row (8 -> 256-wide operands, 128-wide
            lane-dense output; zero-FLOP block-diag redundancy is free).
    tile_b: max batch rows per grid step (amortizes per-step overhead; the
            packed per-tile footprint at 4096 is <1 MiB double-buffered).
    core_parallel: set True on v7x to shard the batch grid across both
            TensorCores (pltpu.CORE_PARALLEL). Default off (1-TC chips).
    """
    B, in_dim = inputs.shape
    H = w1.shape[1]
    out_dim = w3.shape[1]
    dtype = inputs.dtype

    # Accept PyTorch-style (N,) biases as well as (1, N).
    b1 = jnp.atleast_2d(b1)
    b2 = jnp.atleast_2d(b2)
    b3 = jnp.atleast_2d(b3)

    # Pad the batch only to a multiple of pack*8 (<= 63 rows, tiny) so packed
    # rows are a multiple of 8 sublanes and no small-M matmuls are emitted.
    align = pack * 8
    b_pad = _round_up(B, align)
    if b_pad != B:
        inputs = jnp.pad(inputs, ((0, b_pad - B), (0, 0)))
    n_packed = b_pad // pack
    packed_in = pack * in_dim        # 256
    packed_h = pack * H              # 256
    packed_out = pack * out_dim      # 128  -> lane-dense output slab

    # Free row-major reshape: packed row i = batch rows [i*pack, (i+1)*pack).
    x_packed = inputs.reshape(n_packed, packed_in)

    # Block-diagonal weights + tiled biases (built once per call; in a real
    # deployment these would be precomputed alongside the parameters).
    eye = jnp.eye(pack, dtype=w1.dtype)
    w1b = jnp.kron(eye, w1.astype(dtype))    # (packed_in, packed_h)
    w2b = jnp.kron(eye, w2.astype(dtype))    # (packed_h, packed_h)
    w3b = jnp.kron(eye, w3.astype(dtype))    # (packed_h, packed_out)
    b1b = jnp.tile(b1.astype(dtype), (1, pack))
    b2b = jnp.tile(b2.astype(dtype), (1, pack))
    b3b = jnp.tile(b3.astype(dtype), (1, pack))

    # Row tile over packed rows (sublane axis): multiple of 8, clamped to the
    # full array (a partial trailing block is handled by Pallas masking).
    tile_rows = max(8, _round_up(max(1, tile_b // pack), 8))
    if tile_rows >= n_packed:
        tile_rows = n_packed
    n_tiles = pl.cdiv(n_packed, tile_rows)

    itemsize = jnp.dtype(dtype).itemsize
    flops = 2 * n_packed * (packed_in * packed_h
                            + packed_h * packed_h
                            + packed_h * packed_out)
    bytes_accessed = itemsize * (
        n_packed * packed_in                                     # input read
        + w1b.size + b1b.size + w2b.size + b2b.size + w3b.size + b3b.size
        + n_packed * packed_out                                  # mu write
    )

    resident = lambda arr: pl.BlockSpec(arr.shape, lambda i: (0, 0))
    batch_sem = pltpu.CORE_PARALLEL if core_parallel else "parallel"

    mu_packed = pl.pallas_call(
        _ibfcomm_kernel,
        out_shape=jax.ShapeDtypeStruct((n_packed, packed_out), dtype),
        grid=(n_tiles,),
        in_specs=[
            pl.BlockSpec((tile_rows, packed_in), lambda i: (i, 0)),
            resident(w1b), resident(b1b),
            resident(w2b), resident(b2b),
            resident(w3b), resident(b3b),
        ],
        out_specs=pl.BlockSpec((tile_rows, packed_out), lambda i: (i, 0)),
        compiler_params=pltpu.CompilerParams(
            dimension_semantics=(batch_sem,),
            vmem_limit_bytes=32 * 1024 * 1024,
        ),
        cost_estimate=pl.CostEstimate(
            flops=flops, transcendentals=0, bytes_accessed=bytes_accessed),
    )(x_packed, w1b, b1b, w2b, b2b, w3b, b3b)

    # Unpack: (n_packed, pack*out_dim) -> (b_pad, out_dim), drop pad rows.
    mu = mu_packed.reshape(b_pad, out_dim)[:B]
    sigma = jnp.ones_like(mu)   # constant; no reason to burn HBM writes in-kernel
    return mu, sigma


def _reference(inputs, w1, b1, w2, b2, w3, b3):
    h1 = jnp.maximum(inputs @ w1 + b1.reshape(1, -1), 0.0)
    h2 = jnp.maximum(h1 @ w2 + b2.reshape(1, -1), 0.0)
    mu = h2 @ w3 + b3.reshape(1, -1)
    return mu, jnp.ones_like(mu)


if __name__ == "__main__":
    # Config consistent with the module's __init__:
    #   input_shape=32, rnn_hidden_dim=32, comm_embed_dim=4, n_agents=4
    input_shape = 32
    rnn_hidden_dim = 32
    comm_embed_dim = 4
    n_agents = 4
    out_dim = comm_embed_dim * n_agents  # fc3 output = 16

    key = jax.random.PRNGKey(0)
    k = jax.random.split(key, 8)

    # Deterministic parameter init (weights stored as [in, out]).
    w1 = jax.random.normal(k[1], (input_shape, rnn_hidden_dim), jnp.float32) * 0.1
    b1 = jax.random.normal(k[2], (rnn_hidden_dim,), jnp.float32) * 0.1       # (N,) bias
    w2 = jax.random.normal(k[3], (rnn_hidden_dim, rnn_hidden_dim), jnp.float32) * 0.1
    b2 = jax.random.normal(k[4], (1, rnn_hidden_dim), jnp.float32) * 0.1     # (1, N) bias
    w3 = jax.random.normal(k[5], (rnn_hidden_dim, out_dim), jnp.float32) * 0.1
    b3 = jax.random.normal(k[6], (1, out_dim), jnp.float32) * 0.1

    # --- Small batch (module-typical) ---
    B = 8
    inputs = jax.random.normal(k[0], (B, input_shape), dtype=jnp.float32)
    mu, sigma = ibfcomm_forward(inputs, w1, b1, w2, b2, w3, b3)
    jax.block_until_ready((mu, sigma))
    mu_ref, sigma_ref = _reference(inputs, w1, b1, w2, b2, w3, b3)
    assert mu.shape == (B, out_dim) and sigma.shape == (B, out_dim)
    assert jnp.allclose(mu, mu_ref, atol=1e-5, rtol=1e-5)
    assert jnp.allclose(sigma, sigma_ref)

    # --- Larger, non-aligned batch: exercises pad-to-64 + multi-tile grid ---
    B2 = 200
    inputs2 = jax.random.normal(k[7], (B2, input_shape), dtype=jnp.float32)
    mu2, sigma2 = ibfcomm_forward(inputs2, w1, b1, w2, b2, w3, b3, tile_b=64)
    jax.block_until_ready((mu2, sigma2))
    mu2_ref, sigma2_ref = _reference(inputs2, w1, b1, w2, b2, w3, b3)
    assert mu2.shape == (B2, out_dim) and sigma2.shape == (B2, out_dim)
    assert jnp.allclose(mu2, mu2_ref, atol=1e-5, rtol=1e-5)
    assert jnp.allclose(sigma2, sigma2_ref)

    print("KERNEL_OK")
</pallas_src>

<mosaic_0001>
module attributes {stable_mosaic.version = 11 : i64} {
  func.func @_ibfcomm_kernel(%arg0: i32, %arg1: memref<8x256xf32, #tpu.memory_space<vmem>>, %arg2: memref<256x256xf32, #tpu.memory_space<vmem>>, %arg3: memref<1x256xf32, #tpu.memory_space<vmem>>, %arg4: memref<256x256xf32, #tpu.memory_space<vmem>>, %arg5: memref<1x256xf32, #tpu.memory_space<vmem>>, %arg6: memref<256x128xf32, #tpu.memory_space<vmem>>, %arg7: memref<1x128xf32, #tpu.memory_space<vmem>>, %arg8: memref<8x128xf32, #tpu.memory_space<vmem>>) attributes {dimension_semantics = [#tpu.dimension_semantics<parallel>], iteration_bounds = array<i64: 1>, scalar_prefetch = 0 : i64, scratch_operands = 0 : i64, tpu.core_type = #tpu.core_type<tc>, window_params = [{transform_indices = @transform_0, window_bounds = array<i64: 8, 256>}, {pipeline_mode = #tpu.pipeline_mode<synchronous>, transform_indices = @transform_1, window_bounds = array<i64: 256, 256>}, {pipeline_mode = #tpu.pipeline_mode<synchronous>, transform_indices = @transform_2, window_bounds = array<i64: 1, 256>}, {pipeline_mode = #tpu.pipeline_mode<synchronous>, transform_indices = @transform_3, window_bounds = array<i64: 256, 256>}, {pipeline_mode = #tpu.pipeline_mode<synchronous>, transform_indices = @transform_4, window_bounds = array<i64: 1, 256>}, {pipeline_mode = #tpu.pipeline_mode<synchronous>, transform_indices = @transform_5, window_bounds = array<i64: 256, 128>}, {pipeline_mode = #tpu.pipeline_mode<synchronous>, transform_indices = @transform_6, window_bounds = array<i64: 1, 128>}, {transform_indices = @transform_7, window_bounds = array<i64: 8, 128>}]} {
    %c0 = arith.constant 0 : index
    %c0_0 = arith.constant 0 : index
    %0 = vector.load %arg1[%c0, %c0_0] : memref<8x256xf32, #tpu.memory_space<vmem>>, vector<8x256xf32>
    %c0_1 = arith.constant 0 : index
    %c0_2 = arith.constant 0 : index
    %1 = vector.load %arg2[%c0_1, %c0_2] : memref<256x256xf32, #tpu.memory_space<vmem>>, vector<256x256xf32>
    %cst = arith.constant dense<0.000000e+00> : vector<8x256xf32>
    %2 = tpu.matmul %0, %1, %cst {dimension_numbers = #tpu.dot_dimension_numbers<[1], [0], [0], [1], [0, 0, 1, 1], [], []>} : vector<8x256xf32>, vector<256x256xf32>, vector<8x256xf32> -> vector<8x256xf32>
    %c0_3 = arith.constant 0 : index
    %c0_4 = arith.constant 0 : index
    %3 = vector.load %arg3[%c0_3, %c0_4] : memref<1x256xf32, #tpu.memory_space<vmem>>, vector<1x256xf32>
    %4 = vector.broadcast %3 : vector<1x256xf32> to vector<8x256xf32>
    %5 = arith.addf %2, %4 : vector<8x256xf32>
    %cst_5 = arith.constant 0.000000e+00 : f32
    %6 = vector.broadcast %cst_5 : f32 to vector<8x256xf32>
    %7 = arith.maximumf %5, %6 : vector<8x256xf32>
    %c0_6 = arith.constant 0 : index
    %c0_7 = arith.constant 0 : index
    %8 = vector.load %arg4[%c0_6, %c0_7] : memref<256x256xf32, #tpu.memory_space<vmem>>, vector<256x256xf32>
    %cst_8 = arith.constant dense<0.000000e+00> : vector<8x256xf32>
    %9 = tpu.matmul %7, %8, %cst_8 {dimension_numbers = #tpu.dot_dimension_numbers<[1], [0], [0], [1], [0, 0, 1, 1], [], []>} : vector<8x256xf32>, vector<256x256xf32>, vector<8x256xf32> -> vector<8x256xf32>
    %c0_9 = arith.constant 0 : index
    %c0_10 = arith.constant 0 : index
    %10 = vector.load %arg5[%c0_9, %c0_10] : memref<1x256xf32, #tpu.memory_space<vmem>>, vector<1x256xf32>
    %11 = vector.broadcast %10 : vector<1x256xf32> to vector<8x256xf32>
    %12 = arith.addf %9, %11 : vector<8x256xf32>
    %cst_11 = arith.constant 0.000000e+00 : f32
    %13 = vector.broadcast %cst_11 : f32 to vector<8x256xf32>
    %14 = arith.maximumf %12, %13 : vector<8x256xf32>
    %c0_12 = arith.constant 0 : index
    %c0_13 = arith.constant 0 : index
    %15 = vector.load %arg6[%c0_12, %c0_13] : memref<256x128xf32, #tpu.memory_space<vmem>>, vector<256x128xf32>
    %cst_14 = arith.constant dense<0.000000e+00> : vector<8x128xf32>
    %16 = tpu.matmul %14, %15, %cst_14 {dimension_numbers = #tpu.dot_dimension_numbers<[1], [0], [0], [1], [0, 0, 1, 1], [], []>} : vector<8x256xf32>, vector<256x128xf32>, vector<8x128xf32> -> vector<8x128xf32>
    %c0_15 = arith.constant 0 : index
    %c0_16 = arith.constant 0 : index
    %17 = vector.load %arg7[%c0_15, %c0_16] : memref<1x128xf32, #tpu.memory_space<vmem>>, vector<1x128xf32>
    %18 = vector.broadcast %17 : vector<1x128xf32> to vector<8x128xf32>
    %19 = arith.addf %16, %18 : vector<8x128xf32>
    %c0_17 = arith.constant 0 : index
    %c0_18 = arith.constant 0 : index
    %20 = vector.load %arg8[%c0_17, %c0_18] : memref<8x128xf32, #tpu.memory_space<vmem>>, vector<8x128xf32>
    tpu.vector_store %arg8[%c0_17, %c0_18], %19 {strides = array<i32>} : memref<8x128xf32, #tpu.memory_space<vmem>>, vector<8x128xf32>,
    return
  }
  func.func @transform_0(%arg0: i32) -> (i32, i32) {
    %c0_i32 = arith.constant 0 : i32
    %c0_i32_0 = arith.constant 0 : i32
    return %arg0, %c0_i32 : i32, i32
  }
  func.func @transform_1(%arg0: i32) -> (i32, i32) {
    %c0_i32 = arith.constant 0 : i32
    %c0_i32_0 = arith.constant 0 : i32
    %c0_i32_1 = arith.constant 0 : i32
    return %c0_i32, %c0_i32_0 : i32, i32
  }
  func.func @transform_2(%arg0: i32) -> (i32, i32) {
    %c0_i32 = arith.constant 0 : i32
    %c0_i32_0 = arith.constant 0 : i32
    %c0_i32_1 = arith.constant 0 : i32
    return %c0_i32, %c0_i32_0 : i32, i32
  }
  func.func @transform_3(%arg0: i32) -> (i32, i32) {
    %c0_i32 = arith.constant 0 : i32
    %c0_i32_0 = arith.constant 0 : i32
    %c0_i32_1 = arith.constant 0 : i32
    return %c0_i32, %c0_i32_0 : i32, i32
  }
  func.func @transform_4(%arg0: i32) -> (i32, i32) {
    %c0_i32 = arith.constant 0 : i32
    %c0_i32_0 = arith.constant 0 : i32
    %c0_i32_1 = arith.constant 0 : i32
    return %c0_i32, %c0_i32_0 : i32, i32
  }
  func.func @transform_5(%arg0: i32) -> (i32, i32) {
    %c0_i32 = arith.constant 0 : i32
    %c0_i32_0 = arith.constant 0 : i32
    %c0_i32_1 = arith.constant 0 : i32
    return %c0_i32, %c0_i32_0 : i32, i32
  }
  func.func @transform_6(%arg0: i32) -> (i32, i32) {
    %c0_i32 = arith.constant 0 : i32
    %c0_i32_0 = arith.constant 0 : i32
    %c0_i32_1 = arith.constant 0 : i32
    return %c0_i32, %c0_i32_0 : i32, i32
  }
  func.func @transform_7(%arg0: i32) -> (i32, i32) {
    %c0_i32 = arith.constant 0 : i32
    %c0_i32_0 = arith.constant 0 : i32
    return %arg0, %c0_i32 : i32, i32
  }
}

</mosaic_0001>

<llo_original>
// kernel: tpu_custom_call.1
$region0: #{tpu_custom_call.1}
  #allocation0 [shape = 'u32[]', space=smem, size = 0x4, offset = 0x4, fixed_abs, tag = 'smem constant byte address 0x4 - core index']
  #allocation1 [shape = 'u32[72,128]{1,0:T(1,128)}', space=vmem, size = 0x9000, scoped, tag = 'internal scratch']
  %s0 = inlined_call_operand.hbm [shape: f32[8,256], index: 0, kind: input, shape index: {}]
  %s1 = inlined_call_operand.hbm [shape: f32[256,256], index: 1, kind: input, shape index: {}]
  %s2 = inlined_call_operand.hbm [shape: f32[1,256], index: 2, kind: input, shape index: {}]
  %s3 = inlined_call_operand.hbm [shape: f32[256,256], index: 3, kind: input, shape index: {}]
  %s4 = inlined_call_operand.vmem [shape: f32[1,256], index: 4, kind: input, shape index: {}]
  %s5 = inlined_call_operand.hbm [shape: f32[256,128], index: 5, kind: input, shape index: {}]
  %s6 = inlined_call_operand.vmem [shape: f32[1,128], index: 6, kind: input, shape index: {}]
  %s7 = inlined_call_operand.hbm [shape: f32[8,128], index: 7, kind: output, shape index: {}]
  %s8 = sld [smem:[#allocation0]]
  $region58: #{tpu_custom_call.1} parent=0
    _
  %s10 = ssub.s32 1, %s8
  %s11 = scalar_select 0, %s10, %s8
  $region1: #{tpu_custom_call.1} parent=0
    #allocation2 [shape = 'u8[8192]{0}', space=vmem, size = 0x2000, scoped, tag = 'input window, operand 0, single buffered']
    #allocation3 [shape = 's32[1]{0}', space=sflag, size = 0x4, scoped, tag = 'scoped memory for tpu_custom_call.1']
    #allocation4 [shape = 's32[1]{0}', space=sflag, size = 0x4, scoped, tag = 'scoped memory for tpu_custom_call.1']
    #allocation5 [shape = 'u8[262144]{0}', space=vmem, size = 0x40000, scoped, tag = 'input window, operand 1, single buffered']
    #allocation6 [shape = 's32[1]{0}', space=sflag, size = 0x4, scoped, tag = 'scoped memory for tpu_custom_call.1']
    #allocation7 [shape = 'u8[1024]{0}', space=vmem, size = 0x400, scoped, tag = 'input window, operand 2, single buffered']
    #allocation8 [shape = 'u8[262144]{0}', space=vmem, size = 0x40000, scoped, tag = 'input window, operand 3, single buffered']
    #allocation9 [shape = 's32[1]{0}', space=sflag, size = 0x4, scoped, tag = 'scoped memory for tpu_custom_call.1']
    #allocation10 [shape = 'u8[131072]{0}', space=vmem, size = 0x20000, scoped, tag = 'input window, operand 5, single buffered']
    #allocation11 [shape = 'u8[4096]{0}', space=vmem, size = 0x1000, scoped, tag = 'output window, operand 0, single buffered']
    %12 = vsyncpa [#allocation3], 0
    %13 = vsyncpa [#allocation6], 0
    %14 = vsyncpa [#allocation9], 0
    %15 = vsyncpa [#allocation4], 0
    // Predicated region
    $region2: #{tpu_custom_call.1} parent=1 // pred_check
      _
    $region3: #{tpu_custom_call.1} parent=1 // pred_check_branch
      %17 = sbr.rel (0) target = $region5
    $region4: #{tpu_custom_call.1} parent=1 // pred_region
      %19 = vsyncadd [#allocation3], 0
      %s21 = sshll.u32 %s0, 4
      %s22 = int_to_ptr.hbm [resolvable:$true] %s21
      %s23 = sshll.u32 [#allocation2], 4
      %s24 = int_to_ptr.vmem [resolvable:$true] %s23
      %26 = dma.hbm_to_vmem [thread:$0]  %s22, 256, %s24, [#allocation3]
    $region5: #{tpu_custom_call.1} parent=1 // pred_fallthru
      _
    // Predicated region
    $region6: #{tpu_custom_call.1} parent=1 // pred_check
      _
    $region7: #{tpu_custom_call.1} parent=1 // pred_check_branch
      %28 = sbr.rel (0) target = $region9
    $region8: #{tpu_custom_call.1} parent=1 // pred_region
      %30 = vsyncadd [#allocation6], 0
      %s31 = sshll.u32 %s1, 4
      %s32 = int_to_ptr.hbm [resolvable:$true] %s31
      %s33 = sshll.u32 [#allocation5], 4
      %s34 = int_to_ptr.vmem [resolvable:$true] %s33
      %39 = dma.hbm_to_vmem [thread:$0]  %s32, 8192, %s34, [#allocation6], 256, 256, 16
    $region9: #{tpu_custom_call.1} parent=1 // pred_fallthru
      _
    // Predicated region
    $region10: #{tpu_custom_call.1} parent=1 // pred_check
      _
    $region11: #{tpu_custom_call.1} parent=1 // pred_check_branch
      %41 = sbr.rel (0) target = $region13
    $region12: #{tpu_custom_call.1} parent=1 // pred_region
      %43 = vsyncadd [#allocation6], 0
      %s45 = sshll.u32 %s2, 4
      %s46 = int_to_ptr.hbm [resolvable:$true] %s45
      %s47 = sshll.u32 [#allocation7], 4
      %s48 = int_to_ptr.vmem [resolvable:$true] %s47
      %50 = dma.hbm_to_vmem [thread:$0]  %s46, 32, %s48, [#allocation6]
    $region13: #{tpu_custom_call.1} parent=1 // pred_fallthru
      _
    // Predicated region
    $region14: #{tpu_custom_call.1} parent=1 // pred_check
      _
    $region15: #{tpu_custom_call.1} parent=1 // pred_check_branch
      %52 = sbr.rel (0) target = $region17
    $region16: #{tpu_custom_call.1} parent=1 // pred_region
      %54 = vsyncadd [#allocation9], 0
      %s55 = sshll.u32 %s3, 4
      %s56 = int_to_ptr.hbm [resolvable:$true] %s55
      %s57 = sshll.u32 [#allocation8], 4
      %s58 = int_to_ptr.vmem [resolvable:$true] %s57
      %63 = dma.hbm_to_vmem [thread:$0]  %s56, 8192, %s58, [#allocation9], 256, 256, 16
    $region17: #{tpu_custom_call.1} parent=1 // pred_fallthru
      _
    // Predicated region
    $region18: #{tpu_custom_call.1} parent=1 // pred_check
      _
    $region19: #{tpu_custom_call.1} parent=1 // pred_check_branch
      %65 = sbr.rel (0) target = $region21
    $region20: #{tpu_custom_call.1} parent=1 // pred_region
      _
    $region21: #{tpu_custom_call.1} parent=1 // pred_fallthru
      _
    // Predicated region
    $region22: #{tpu_custom_call.1} parent=1 // pred_check
      _
    $region23: #{tpu_custom_call.1} parent=1 // pred_check_branch
      %67 = sbr.rel (0) target = $region25
    $region24: #{tpu_custom_call.1} parent=1 // pred_region
      %69 = vsyncadd [#allocation9], 0
      %s70 = sshll.u32 %s5, 4
      %s71 = int_to_ptr.hbm [resolvable:$true] %s70
      %s72 = sshll.u32 [#allocation10], 4
      %s73 = int_to_ptr.vmem [resolvable:$true] %s72
      %78 = dma.hbm_to_vmem [thread:$0]  %s71, 4096, %s73, [#allocation9], 128, 128, 8
    $region25: #{tpu_custom_call.1} parent=1 // pred_fallthru
      _
    // Predicated region
    $region26: #{tpu_custom_call.1} parent=1 // pred_check
      _
    $region27: #{tpu_custom_call.1} parent=1 // pred_check_branch
      %80 = sbr.rel (0) target = $region29
    $region28: #{tpu_custom_call.1} parent=1 // pred_region
      _
    $region29: #{tpu_custom_call.1} parent=1 // pred_fallthru
      _
    // Predicated region
    $region30: #{tpu_custom_call.1} parent=1 // pred_check
      _
    $region31: #{tpu_custom_call.1} parent=1 // pred_check_branch
      %82 = sbr.rel (0) target = $region33
    $region32: #{tpu_custom_call.1} parent=1 // pred_region
      %84 = dma.done [#allocation3], 256
    $region33: #{tpu_custom_call.1} parent=1 // pred_fallthru
      _
    // Predicated region
    $region34: #{tpu_custom_call.1} parent=1 // pred_check
      _
    $region35: #{tpu_custom_call.1} parent=1 // pred_check_branch
      %86 = sbr.rel (0) target = $region37
    $region36: #{tpu_custom_call.1} parent=1 // pred_region
      %88 = dma.done [#allocation6], 8192
    $region37: #{tpu_custom_call.1} parent=1 // pred_fallthru
      _
    // Predicated region
    $region38: #{tpu_custom_call.1} parent=1 // pred_check
      _
    $region39: #{tpu_custom_call.1} parent=1 // pred_check_branch
      %90 = sbr.rel (0) target = $region41
    $region40: #{tpu_custom_call.1} parent=1 // pred_region
      %92 = dma.done [#allocation6], 32
    $region41: #{tpu_custom_call.1} parent=1 // pred_fallthru
      _
    // Predicated region
    $region42: #{tpu_custom_call.1} parent=1 // pred_check
      _
    $region43: #{tpu_custom_call.1} parent=1 // pred_check_branch
      %94 = sbr.rel (0) target = $region45
    $region44: #{tpu_custom_call.1} parent=1 // pred_region
      %96 = dma.done [#allocation9], 8192
    $region45: #{tpu_custom_call.1} parent=1 // pred_fallthru
      _
    // Predicated region
    $region46: #{tpu_custom_call.1} parent=1 // pred_check
      _
    $region47: #{tpu_custom_call.1} parent=1 // pred_check_branch
      %98 = sbr.rel (0) target = $region49
    $region48: #{tpu_custom_call.1} parent=1 // pred_region
      %100 = dma.done [#allocation9], 4096
    $region49: #{tpu_custom_call.1} parent=1 // pred_fallthru
      _
    %v101 = vld [vmem:[#allocation2] sm:$0xff]
    %v102 = vld [vmem:[#allocation2 + $0x8] sm:$0xff]
    %v103 = vld [vmem:[#allocation5] sm:$0xff]
    %v104 = vld [vmem:[#allocation5 + $0x8] sm:$0xff]
    %v105 = vld [vmem:[#allocation5 + $0x10] sm:$0xff]
    %v106 = vld [vmem:[#allocation5 + $0x18] sm:$0xff]
    %v107 = vld [vmem:[#allocation5 + $0x20] sm:$0xff]
    %v108 = vld [vmem:[#allocation5 + $0x28] sm:$0xff]
    %v109 = vld [vmem:[#allocation5 + $0x30] sm:$0xff]
    %v110 = vld [vmem:[#allocation5 + $0x38] sm:$0xff]
    %v111 = vld [vmem:[#allocation5 + $0x40] sm:$0xff]
    %v112 = vld [vmem:[#allocation5 + $0x48] sm:$0xff]
    %v113 = vld [vmem:[#allocation5 + $0x50] sm:$0xff]
    %v114 = vld [vmem:[#allocation5 + $0x58] sm:$0xff]
    %v115 = vld [vmem:[#allocation5 + $0x60] sm:$0xff]
    %v116 = vld [vmem:[#allocation5 + $0x68] sm:$0xff]
    %v117 = vld [vmem:[#allocation5 + $0x70] sm:$0xff]
    %v118 = vld [vmem:[#allocation5 + $0x78] sm:$0xff]
    %v119 = vld [vmem:[#allocation5 + $0x80] sm:$0xff]
    %v120 = vld [vmem:[#allocation5 + $0x88] sm:$0xff]
    %v121 = vld [vmem:[#allocation5 + $0x90] sm:$0xff]
    %v122 = vld [vmem:[#allocation5 + $0x98] sm:$0xff]
    %v123 = vld [vmem:[#allocation5 + $0xa0] sm:$0xff]
    %v124 = vld [vmem:[#allocation5 + $0xa8] sm:$0xff]
    %v125 = vld [vmem:[#allocation5 + $0xb0] sm:$0xff]
    %v126 = vld [vmem:[#allocation5 + $0xb8] sm:$0xff]
    %v127 = vld [vmem:[#allocation5 + $0xc0] sm:$0xff]
    %v128 = vld [vmem:[#allocation5 + $0xc8] sm:$0xff]
    %v129 = vld [vmem:[#allocation5 + $0xd0] sm:$0xff]
    %v130 = vld [vmem:[#allocation5 + $0xd8] sm:$0xff]
    %v131 = vld [vmem:[#allocation5 + $0xe0] sm:$0xff]
    %v132 = vld [vmem:[#allocation5 + $0xe8] sm:$0xff]
    %v133 = vld [vmem:[#allocation5 + $0xf0] sm:$0xff]
    %v134 = vld [vmem:[#allocation5 + $0xf8] sm:$0xff]
    %v135 = vld [vmem:[#allocation5 + $0x100] sm:$0xff]
    %v136 = vld [vmem:[#allocation5 + $0x108] sm:$0xff]
    %v137 = vld [vmem:[#allocation5 + $0x110] sm:$0xff]
    %v138 = vld [vmem:[#allocation5 + $0x118] sm:$0xff]
    %v139 = vld [vmem:[#allocation5 + $0x120] sm:$0xff]
    %v140 = vld [vmem:[#allocation5 + $0x128] sm:$0xff]
    %v141 = vld [vmem:[#allocation5 + $0x130] sm:$0xff]
    %v142 = vld [vmem:[#allocation5 + $0x138] sm:$0xff]
    %v143 = vld [vmem:[#allocation5 + $0x140] sm:$0xff]
    %v144 = vld [vmem:[#allocation5 + $0x148] sm:$0xff]
    %v145 = vld [vmem:[#allocation5 + $0x150] sm:$0xff]
    %v146 = vld [vmem:[#allocation5 + $0x158] sm:$0xff]
    %v147 = vld [vmem:[#allocation5 + $0x160] sm:$0xff]
    %v148 = vld [vmem:[#allocation5 + $0x168] sm:$0xff]
    %v149 = vld [vmem:[#allocation5 + $0x170] sm:$0xff]
    %v150 = vld [vmem:[#allocation5 + $0x178] sm:$0xff]
    %v151 = vld [vmem:[#allocation5 + $0x180] sm:$0xff]
    %v152 = vld [vmem:[#allocation5 + $0x188] sm:$0xff]
    %v153 = vld [vmem:[#allocation5 + $0x190] sm:$0xff]
    %v154 = vld [vmem:[#allocation5 + $0x198] sm:$0xff]
    %v155 = vld [vmem:[#allocation5 + $0x1a0] sm:$0xff]
    %v156 = vld [vmem:[#allocation5 + $0x1a8] sm:$0xff]
    %v157 = vld [vmem:[#allocation5 + $0x1b0] sm:$0xff]
    %v158 = vld [vmem:[#allocation5 + $0x1b8] sm:$0xff]
    %v159 = vld [vmem:[#allocation5 + $0x1c0] sm:$0xff]
    %v160 = vld [vmem:[#allocation5 + $0x1c8] sm:$0xff]
    %v161 = vld [vmem:[#allocation5 + $0x1d0] sm:$0xff]
    %v162 = vld [vmem:[#allocation5 + $0x1d8] sm:$0xff]
    %v163 = vld [vmem:[#allocation5 + $0x1e0] sm:$0xff]
    %v164 = vld [vmem:[#allocation5 + $0x1e8] sm:$0xff]
    %v165 = vld [vmem:[#allocation5 + $0x1f0] sm:$0xff]
    %v166 = vld [vmem:[#allocation5 + $0x1f8] sm:$0xff]
    %v167 = vld [vmem:[#allocation7] sm:$0x3]
    %v169 = vperm.slane %v167, 0
    %v170 = vperm.slane %v167, 1
    %173 = vmatpush.msra.mxu0 %v133
    %174 = vmatpush.msra.mxu0 %v131
    %175 = vmatpush.msra.mxu0 %v129
    %176 = vmatpush.msra.mxu0 %v127
    %177 = vmatpush.msra.mxu0 %v125
    %178 = vmatpush.msra.mxu0 %v123
    %179 = vmatpush.msra.mxu0 %v121
    %180 = vmatpush.msra.mxu0 %v119
    %181 = vmatpush.msra.mxu0 %v117
    %182 = vmatpush.msra.mxu0 %v115
    %183 = vmatpush.msra.mxu0 %v113
    %184 = vmatpush.msra.mxu0 %v111
    %185 = vmatpush.msra.mxu0 %v109
    %186 = vmatpush.msra.mxu0 %v107
    %187 = vmatpush.msra.mxu0 %v105
    %188 = vmatpush.msra.mxu0 %v103
    %189 = vmatmul.f32.gmra.mxu0 %v101
    %v190 = vpop.f32.mrf.mxu0
    %v191 = vadd.f32 %v169, %v190
    %192 = vdwg.mxu0
    %193 = vmatpush.msra.mxu0 %v165
    %194 = vmatpush.msra.mxu0 %v163
    %195 = vmatpush.msra.mxu0 %v161
    %196 = vmatpush.msra.mxu0 %v159
    %197 = vmatpush.msra.mxu0 %v157
    %198 = vmatpush.msra.mxu0 %v155
    %199 = vmatpush.msra.mxu0 %v153
    %200 = vmatpush.msra.mxu0 %v151
    %201 = vmatpush.msra.mxu0 %v149
    %202 = vmatpush.msra.mxu0 %v147
    %203 = vmatpush.msra.mxu0 %v145
    %204 = vmatpush.msra.mxu0 %v143
    %205 = vmatpush.msra.mxu0 %v141
    %206 = vmatpush.msra.mxu0 %v139
    %207 = vmatpush.msra.mxu0 %v137
    %208 = vmatpush.msra.mxu0 %v135
    %209 = vmatmul.f32.gmra.mxu0 %v102
    %v210 = vpop.f32.mrf.mxu0
    %v211 = vadd.f32 %v191, %v210
    %212 = vdwg.mxu0
    %213 = vmatpush.msra.mxu0 %v134
    %214 = vmatpush.msra.mxu0 %v132
    %215 = vmatpush.msra.mxu0 %v130
    %216 = vmatpush.msra.mxu0 %v128
    %217 = vmatpush.msra.mxu0 %v126
    %218 = vmatpush.msra.mxu0 %v124
    %219 = vmatpush.msra.mxu0 %v122
    %220 = vmatpush.msra.mxu0 %v120
    %221 = vmatpush.msra.mxu0 %v118
    %222 = vmatpush.msra.mxu0 %v116
    %223 = vmatpush.msra.mxu0 %v114
    %224 = vmatpush.msra.mxu0 %v112
    %225 = vmatpush.msra.mxu0 %v110
    %226 = vmatpush.msra.mxu0 %v108
    %227 = vmatpush.msra.mxu0 %v106
    %228 = vmatpush.msra.mxu0 %v104
    %229 = vmatmul.f32.gmra.mxu0 %v101
    %v230 = vpop.f32.mrf.mxu0
    %v231 = vadd.f32 %v170, %v230
    %232 = vdwg.mxu0
    %233 = vmatpush.msra.mxu0 %v166
    %234 = vmatpush.msra.mxu0 %v164
    %235 = vmatpush.msra.mxu0 %v162
    %236 = vmatpush.msra.mxu0 %v160
    %237 = vmatpush.msra.mxu0 %v158
    %238 = vmatpush.msra.mxu0 %v156
    %239 = vmatpush.msra.mxu0 %v154
    %240 = vmatpush.msra.mxu0 %v152
    %241 = vmatpush.msra.mxu0 %v150
    %242 = vmatpush.msra.mxu0 %v148
    %243 = vmatpush.msra.mxu0 %v146
    %244 = vmatpush.msra.mxu0 %v144
    %245 = vmatpush.msra.mxu0 %v142
    %246 = vmatpush.msra.mxu0 %v140
    %247 = vmatpush.msra.mxu0 %v138
    %248 = vmatpush.msra.mxu0 %v136
    %249 = vmatmul.f32.gmra.mxu0 %v102
    %v250 = vpop.f32.mrf.mxu0
    %v251 = vadd.f32 %v231, %v250
    %252 = vdwg.mxu0
    %v253 = vmax.f32 %v211, 0.0
    %v254 = vmax.f32 %v251, 0.0
    %v255 = vld [vmem:[#allocation8] sm:$0xff]
    %v256 = vld [vmem:[#allocation8 + $0x8] sm:$0xff]
    %v257 = vld [vmem:[#allocation8 + $0x10] sm:$0xff]
    %v258 = vld [vmem:[#allocation8 + $0x18] sm:$0xff]
    %v259 = vld [vmem:[#allocation8 + $0x20] sm:$0xff]
    %v260 = vld [vmem:[#allocation8 + $0x28] sm:$0xff]
    %v261 = vld [vmem:[#allocation8 + $0x30] sm:$0xff]
    %v262 = vld [vmem:[#allocation8 + $0x38] sm:$0xff]
    %v263 = vld [vmem:[#allocation8 + $0x40] sm:$0xff]
    %v264 = vld [vmem:[#allocation8 + $0x48] sm:$0xff]
    %v265 = vld [vmem:[#allocation8 + $0x50] sm:$0xff]
    %v266 = vld [vmem:[#allocation8 + $0x58] sm:$0xff]
    %v267 = vld [vmem:[#allocation8 + $0x60] sm:$0xff]
    %v268 = vld [vmem:[#allocation8 + $0x68] sm:$0xff]
    %v269 = vld [vmem:[#allocation8 + $0x70] sm:$0xff]
    %v270 = vld [vmem:[#allocation8 + $0x78] sm:$0xff]
    %v271 = vld [vmem:[#allocation8 + $0x80] sm:$0xff]
    %v272 = vld [vmem:[#allocation8 + $0x88] sm:$0xff]
    %v273 = vld [vmem:[#allocation8 + $0x90] sm:$0xff]
    %v274 = vld [vmem:[#allocation8 + $0x98] sm:$0xff]
    %v275 = vld [vmem:[#allocation8 + $0xa0] sm:$0xff]
    %v276 = vld [vmem:[#allocation8 + $0xa8] sm:$0xff]
    %v277 = vld [vmem:[#allocation8 + $0xb0] sm:$0xff]
    %v278 = vld [vmem:[#allocation8 + $0xb8] sm:$0xff]
    %v279 = vld [vmem:[#allocation8 + $0xc0] sm:$0xff]
    %v280 = vld [vmem:[#allocation8 + $0xc8] sm:$0xff]
    %v281 = vld [vmem:[#allocation8 + $0xd0] sm:$0xff]
    %v282 = vld [vmem:[#allocation8 + $0xd8] sm:$0xff]
    %v283 = vld [vmem:[#allocation8 + $0xe0] sm:$0xff]
    %v284 = vld [vmem:[#allocation8 + $0xe8] sm:$0xff]
    %v285 = vld [vmem:[#allocation8 + $0xf0] sm:$0xff]
    %v286 = vld [vmem:[#allocation8 + $0xf8] sm:$0xff]
    %v287 = vld [vmem:[#allocation8 + $0x100] sm:$0xff]
    %v288 = vld [vmem:[#allocation8 + $0x108] sm:$0xff]
    %v289 = vld [vmem:[#allocation8 + $0x110] sm:$0xff]
    %v290 = vld [vmem:[#allocation8 + $0x118] sm:$0xff]
    %v291 = vld [vmem:[#allocation8 + $0x120] sm:$0xff]
    %v292 = vld [vmem:[#allocation8 + $0x128] sm:$0xff]
    %v293 = vld [vmem:[#allocation8 + $0x130] sm:$0xff]
    %v294 = vld [vmem:[#allocation8 + $0x138] sm:$0xff]
    %v295 = vld [vmem:[#allocation8 + $0x140] sm:$0xff]
    %v296 = vld [vmem:[#allocation8 + $0x148] sm:$0xff]
    %v297 = vld [vmem:[#allocation8 + $0x150] sm:$0xff]
    %v298 = vld [vmem:[#allocation8 + $0x158] sm:$0xff]
    %v299 = vld [vmem:[#allocation8 + $0x160] sm:$0xff]
    %v300 = vld [vmem:[#allocation8 + $0x168] sm:$0xff]
    %v301 = vld [vmem:[#allocation8 + $0x170] sm:$0xff]
    %v302 = vld [vmem:[#allocation8 + $0x178] sm:$0xff]
    %v303 = vld [vmem:[#allocation8 + $0x180] sm:$0xff]
    %v304 = vld [vmem:[#allocation8 + $0x188] sm:$0xff]
    %v305 = vld [vmem:[#allocation8 + $0x190] sm:$0xff]
    %v306 = vld [vmem:[#allocation8 + $0x198] sm:$0xff]
    %v307 = vld [vmem:[#allocation8 + $0x1a0] sm:$0xff]
    %v308 = vld [vmem:[#allocation8 + $0x1a8] sm:$0xff]
    %v309 = vld [vmem:[#allocation8 + $0x1b0] sm:$0xff]
    %v310 = vld [vmem:[#allocation8 + $0x1b8] sm:$0xff]
    %v311 = vld [vmem:[#allocation8 + $0x1c0] sm:$0xff]
    %v312 = vld [vmem:[#allocation8 + $0x1c8] sm:$0xff]
    %v313 = vld [vmem:[#allocation8 + $0x1d0] sm:$0xff]
    %v314 = vld [vmem:[#allocation8 + $0x1d8] sm:$0xff]
    %v315 = vld [vmem:[#allocation8 + $0x1e0] sm:$0xff]
    %v316 = vld [vmem:[#allocation8 + $0x1e8] sm:$0xff]
    %v317 = vld [vmem:[#allocation8 + $0x1f0] sm:$0xff]
    %v318 = vld [vmem:[#allocation8 + $0x1f8] sm:$0xff]
    %v319 = vld [vmem:[%s4] sm:$0x3]
    %v321 = vperm.slane %v319, 0
    %v322 = vperm.slane %v319, 1
    %325 = vmatpush.msra.mxu0 %v285
    %326 = vmatpush.msra.mxu0 %v283
    %327 = vmatpush.msra.mxu0 %v281
    %328 = vmatpush.msra.mxu0 %v279
    %329 = vmatpush.msra.mxu0 %v277
    %330 = vmatpush.msra.mxu0 %v275
    %331 = vmatpush.msra.mxu0 %v273
    %332 = vmatpush.msra.mxu0 %v271
    %333 = vmatpush.msra.mxu0 %v269
    %334 = vmatpush.msra.mxu0 %v267
    %335 = vmatpush.msra.mxu0 %v265
    %336 = vmatpush.msra.mxu0 %v263
    %337 = vmatpush.msra.mxu0 %v261
    %338 = vmatpush.msra.mxu0 %v259
    %339 = vmatpush.msra.mxu0 %v257
    %340 = vmatpush.msra.mxu0 %v255
    %341 = vmatmul.f32.gmra.mxu0 %v253
    %v342 = vpop.f32.mrf.mxu0
    %v343 = vadd.f32 %v321, %v342
    %344 = vdwg.mxu0
    %345 = vmatpush.msra.mxu0 %v317
    %346 = vmatpush.msra.mxu0 %v315
    %347 = vmatpush.msra.mxu0 %v313
    %348 = vmatpush.msra.mxu0 %v311
    %349 = vmatpush.msra.mxu0 %v309
    %350 = vmatpush.msra.mxu0 %v307
    %351 = vmatpush.msra.mxu0 %v305
    %352 = vmatpush.msra.mxu0 %v303
    %353 = vmatpush.msra.mxu0 %v301
    %354 = vmatpush.msra.mxu0 %v299
    %355 = vmatpush.msra.mxu0 %v297
    %356 = vmatpush.msra.mxu0 %v295
    %357 = vmatpush.msra.mxu0 %v293
    %358 = vmatpush.msra.mxu0 %v291
    %359 = vmatpush.msra.mxu0 %v289
    %360 = vmatpush.msra.mxu0 %v287
    %361 = vmatmul.f32.gmra.mxu0 %v254
    %v362 = vpop.f32.mrf.mxu0
    %v363 = vadd.f32 %v343, %v362
    %364 = vdwg.mxu0
    %365 = vmatpush.msra.mxu0 %v286
    %366 = vmatpush.msra.mxu0 %v284
    %367 = vmatpush.msra.mxu0 %v282
    %368 = vmatpush.msra.mxu0 %v280
    %369 = vmatpush.msra.mxu0 %v278
    %370 = vmatpush.msra.mxu0 %v276
    %371 = vmatpush.msra.mxu0 %v274
    %372 = vmatpush.msra.mxu0 %v272
    %373 = vmatpush.msra.mxu0 %v270
    %374 = vmatpush.msra.mxu0 %v268
    %375 = vmatpush.msra.mxu0 %v266
    %376 = vmatpush.msra.mxu0 %v264
    %377 = vmatpush.msra.mxu0 %v262
    %378 = vmatpush.msra.mxu0 %v260
    %379 = vmatpush.msra.mxu0 %v258
    %380 = vmatpush.msra.mxu0 %v256
    %381 = vmatmul.f32.gmra.mxu0 %v253
    %v382 = vpop.f32.mrf.mxu0
    %v383 = vadd.f32 %v322, %v382
    %384 = vdwg.mxu0
    %385 = vmatpush.msra.mxu0 %v318
    %386 = vmatpush.msra.mxu0 %v316
    %387 = vmatpush.msra.mxu0 %v314
    %388 = vmatpush.msra.mxu0 %v312
    %389 = vmatpush.msra.mxu0 %v310
    %390 = vmatpush.msra.mxu0 %v308
    %391 = vmatpush.msra.mxu0 %v306
    %392 = vmatpush.msra.mxu0 %v304
    %393 = vmatpush.msra.mxu0 %v302
    %394 = vmatpush.msra.mxu0 %v300
    %395 = vmatpush.msra.mxu0 %v298
    %396 = vmatpush.msra.mxu0 %v296
    %397 = vmatpush.msra.mxu0 %v294
    %398 = vmatpush.msra.mxu0 %v292
    %399 = vmatpush.msra.mxu0 %v290
    %400 = vmatpush.msra.mxu0 %v288
    %401 = vmatmul.f32.gmra.mxu0 %v254
    %v402 = vpop.f32.mrf.mxu0
    %v403 = vadd.f32 %v383, %v402
    %404 = vdwg.mxu0
    %v405 = vmax.f32 %v363, 0.0
    %v406 = vmax.f32 %v403, 0.0
    %v407 = vld [vmem:[#allocation10] sm:$0xff]
    %v408 = vld [vmem:[#allocation10 + $0x8] sm:$0xff]
    %v409 = vld [vmem:[#allocation10 + $0x10] sm:$0xff]
    %v410 = vld [vmem:[#allocation10 + $0x18] sm:$0xff]
    %v411 = vld [vmem:[#allocation10 + $0x20] sm:$0xff]
    %v412 = vld [vmem:[#allocation10 + $0x28] sm:$0xff]
    %v413 = vld [vmem:[#allocation10 + $0x30] sm:$0xff]
    %v414 = vld [vmem:[#allocation10 + $0x38] sm:$0xff]
    %v415 = vld [vmem:[#allocation10 + $0x40] sm:$0xff]
    %v416 = vld [vmem:[#allocation10 + $0x48] sm:$0xff]
    %v417 = vld [vmem:[#allocation10 + $0x50] sm:$0xff]
    %v418 = vld [vmem:[#allocation10 + $0x58] sm:$0xff]
    %v419 = vld [vmem:[#allocation10 + $0x60] sm:$0xff]
    %v420 = vld [vmem:[#allocation10 + $0x68] sm:$0xff]
    %v421 = vld [vmem:[#allocation10 + $0x70] sm:$0xff]
    %v422 = vld [vmem:[#allocation10 + $0x78] sm:$0xff]
    %v423 = vld [vmem:[#allocation10 + $0x80] sm:$0xff]
    %v424 = vld [vmem:[#allocation10 + $0x88] sm:$0xff]
    %v425 = vld [vmem:[#allocation10 + $0x90] sm:$0xff]
    %v426 = vld [vmem:[#allocation10 + $0x98] sm:$0xff]
    %v427 = vld [vmem:[#allocation10 + $0xa0] sm:$0xff]
    %v428 = vld [vmem:[#allocation10 + $0xa8] sm:$0xff]
    %v429 = vld [vmem:[#allocation10 + $0xb0] sm:$0xff]
    %v430 = vld [vmem:[#allocation10 + $0xb8] sm:$0xff]
    %v431 = vld [vmem:[#allocation10 + $0xc0] sm:$0xff]
    %v432 = vld [vmem:[#allocation10 + $0xc8] sm:$0xff]
    %v433 = vld [vmem:[#allocation10 + $0xd0] sm:$0xff]
    %v434 = vld [vmem:[#allocation10 + $0xd8] sm:$0xff]
    %v435 = vld [vmem:[#allocation10 + $0xe0] sm:$0xff]
    %v436 = vld [vmem:[#allocation10 + $0xe8] sm:$0xff]
    %v437 = vld [vmem:[#allocation10 + $0xf0] sm:$0xff]
    %v438 = vld [vmem:[#allocation10 + $0xf8] sm:$0xff]
    %v439 = vld [vmem:[%s6] sm:$0x1]
    %v441 = vperm.slane %v439, 0
    %443 = vmatpush.msra.mxu0 %v422
    %444 = vmatpush.msra.mxu0 %v421
    %445 = vmatpush.msra.mxu0 %v420
    %446 = vmatpush.msra.mxu0 %v419
    %447 = vmatpush.msra.mxu0 %v418
    %448 = vmatpush.msra.mxu0 %v417
    %449 = vmatpush.msra.mxu0 %v416
    %450 = vmatpush.msra.mxu0 %v415
    %451 = vmatpush.msra.mxu0 %v414
    %452 = vmatpush.msra.mxu0 %v413
    %453 = vmatpush.msra.mxu0 %v412
    %454 = vmatpush.msra.mxu0 %v411
    %455 = vmatpush.msra.mxu0 %v410
    %456 = vmatpush.msra.mxu0 %v409
    %457 = vmatpush.msra.mxu0 %v408
    %458 = vmatpush.msra.mxu0 %v407
    %459 = vmatmul.f32.gmra.mxu0 %v405
    %v460 = vpop.f32.mrf.mxu0
    %v461 = vadd.f32 %v441, %v460
    %462 = vdwg.mxu0
    %463 = vmatpush.msra.mxu0 %v438
    %464 = vmatpush.msra.mxu0 %v437
    %465 = vmatpush.msra.mxu0 %v436
    %466 = vmatpush.msra.mxu0 %v435
    %467 = vmatpush.msra.mxu0 %v434
    %468 = vmatpush.msra.mxu0 %v433
    %469 = vmatpush.msra.mxu0 %v432
    %470 = vmatpush.msra.mxu0 %v431
    %471 = vmatpush.msra.mxu0 %v430
    %472 = vmatpush.msra.mxu0 %v429
    %473 = vmatpush.msra.mxu0 %v428
    %474 = vmatpush.msra.mxu0 %v427
    %475 = vmatpush.msra.mxu0 %v426
    %476 = vmatpush.msra.mxu0 %v425
    %477 = vmatpush.msra.mxu0 %v424
    %478 = vmatpush.msra.mxu0 %v423
    %479 = vmatmul.f32.gmra.mxu0 %v406
    %v480 = vpop.f32.mrf.mxu0
    %v481 = vadd.f32 %v461, %v480
    %482 = vdwg.mxu0
    %483 = vst [vmem:[#allocation11] sm:$0xff] %v481
    // Predicated region
    $region50: #{tpu_custom_call.1} parent=1 // pred_check
      _
    $region51: #{tpu_custom_call.1} parent=1 // pred_check_branch
      %485 = sbr.rel (0) target = $region53
    $region52: #{tpu_custom_call.1} parent=1 // pred_region
      %487 = vsyncadd [#allocation4], 0
      %s489 = sshll.u32 [#allocation11], 4
      %s490 = int_to_ptr.vmem [resolvable:$true] %s489
      %s491 = sshll.u32 %s7, 4
      %s492 = int_to_ptr.hbm [resolvable:$true] %s491
      %494 = dma.vmem_to_hbm [thread:$0]  %s490, 128, %s492, [#allocation4]
    $region53: #{tpu_custom_call.1} parent=1 // pred_fallthru
      _
    // Predicated region
    $region54: #{tpu_custom_call.1} parent=1 // pred_check
      _
    $region55: #{tpu_custom_call.1} parent=1 // pred_check_branch
      %496 = sbr.rel (0) target = $region57
    $region56: #{tpu_custom_call.1} parent=1 // pred_region
      %498 = dma.done [#allocation4], 128
    $region57: #{tpu_custom_call.1} parent=1 // pred_fallthru
      _
    %499 = vsyncpa [#allocation3], 1
    %500 = vsyncpa [#allocation6], 1
    %501 = vsyncpa [#allocation9], 1
    %502 = vsyncpa [#allocation4], 1

</llo_original>
